<compile_context>
chip_gen: v7x
topology: tpu7x:2x2x1
jax: 0.10.0
libtpu: 0.0.40
codegen_flags: <defaults>
</compile_context>

<pallas_src>
import functools

import jax
import jax.numpy as jnp
from jax.experimental import pallas as pl
from jax.experimental.pallas import tpu as pltpu


def _round_up(v, m):
    return ((v + m - 1) // m) * m


def _sublane(dtype):
    # rows per packed vreg sublane group: 8 (f32), 16 (bf16), 32 (int8/fp8)
    return max(8, 32 // jnp.dtype(dtype).itemsize)


def _classifier_kernel(x_ref, w_ref, b_ref, o_ref):
    # x_ref: (TM, K)   activation tile
    # w_ref: (K, TN)   pre-transposed vocab tile of the weight
    # b_ref: (1, TN)   matching bias tile
    # o_ref: (TM, TN)  output logits tile
    acc = jnp.dot(x_ref[...], w_ref[...], preferred_element_type=jnp.float32)
    o_ref[...] = (acc + b_ref[...].astype(jnp.float32)).astype(o_ref.dtype)


def prepare_classifier_params(weight, bias, *, tile_n=512, param_dtype=None):
    """One-time parameter prep (call at init, NOT per forward).

    Pads the vocab dim up to a multiple of 128 (only), picks an effective
    tile_n that divides the padded vocab, and pre-transposes the weight to
    (in_features, n_padded). Returns (w_t_padded, b_padded_2d, tile_n_eff).
    """
    out_features, in_features = weight.shape
    if param_dtype is not None:
        weight = weight.astype(param_dtype)
        bias = bias.astype(param_dtype)

    n_padded = _round_up(out_features, 128)
    if n_padded != out_features:
        weight = jnp.pad(weight, ((0, n_padded - out_features), (0, 0)))
        bias = jnp.pad(bias, ((0, n_padded - out_features),))

    # Largest multiple of 128 that divides n_padded and is <= requested tile_n.
    tile_n_eff = 128
    max_blocks = max(1, min(tile_n, n_padded) // 128)
    for t in range(max_blocks, 0, -1):
        if n_padded % (t * 128) == 0:
            tile_n_eff = t * 128
            break

    w_t = weight.T  # (in_features, n_padded); one-time transpose, outside hot path
    return w_t, bias.reshape(1, n_padded), tile_n_eff


@functools.partial(jax.jit,
                   static_argnames=("out_features", "tile_m", "tile_n", "out_dtype"))
def classifier_forward_padded(x, w_t, b_padded, *, out_features,
                              tile_m=512, tile_n=512, out_dtype=None):
    """Pallas forward for nn.Linear(in_features, out_features) on prepped params.

    x:        (..., in_features)
    w_t:      (in_features, n_padded), pre-transposed; n_padded % tile_n == 0
    b_padded: (1, n_padded)
    returns   (..., out_features) in out_dtype (default: x.dtype)
    """
    in_features = x.shape[-1]
    lead_shape = x.shape[:-1]
    n_padded = w_t.shape[1]
    if out_dtype is None:
        out_dtype = x.dtype

    assert w_t.shape[0] == in_features, "weight/input feature mismatch"
    assert tile_n % 128 == 0 and n_padded % tile_n == 0, \
        "use prepare_classifier_params and pass its tile_n back here"

    x2d = x.reshape(-1, in_features)
    m = x2d.shape[0]
    xb = jnp.dtype(x.dtype).itemsize
    ob = jnp.dtype(out_dtype).itemsize
    wb = jnp.dtype(w_t.dtype).itemsize
    bb = jnp.dtype(b_padded.dtype).itemsize

    # --- choose the M tile -------------------------------------------------
    sub = _sublane(x.dtype)
    m_rounded = _round_up(m, sub)
    # Keep x fully resident (single M block) when it and its output tile fit a
    # modest VMEM budget -> the weight AND the activation each stream once.
    resident_ok = (m_rounded * in_features * xb <= (8 << 20) and
                   m_rounded * tile_n * (2 * ob + 4) <= (16 << 20))
    if resident_ok:
        tile_m_eff = m_rounded
    else:
        tile_m_eff = _round_up(min(tile_m, m_rounded), sub)
    mp = _round_up(m, tile_m_eff)
    if mp != m:
        x2d = jnp.pad(x2d, ((0, mp - m), (0, 0)))

    # Vocab axis OUTER (W tile fetched once total; megacore shards vocab on v7x),
    # M axis INNER (only the small activation is re-streamed).
    grid = (n_padded // tile_n, mp // tile_m_eff)

    # --- VMEM budget hint ---------------------------------------------------
    tile_bytes = (2 * tile_m_eff * in_features * xb      # x tile (double-buffered)
                  + 2 * in_features * tile_n * wb        # weight tile
                  + 2 * tile_n * bb                      # bias tile
                  + 2 * tile_m_eff * tile_n * ob         # output tile
                  + 2 * tile_m_eff * tile_n * 4)         # f32 MXU result / acc staging
    try:
        vmem_cap = int(pltpu.get_tpu_info().vmem_capacity_bytes)
    except Exception:
        vmem_cap = 64 << 20  # conservative (v7x per-TC VMEM)
    vmem_limit = min((vmem_cap * 3) // 4,
                     max(32 << 20, int(tile_bytes * 1.25) + (4 << 20)))

    cost = pl.CostEstimate(
        flops=2 * mp * n_padded * in_features,
        transcendentals=0,
        bytes_accessed=(mp * in_features * xb
                        + in_features * n_padded * wb
                        + n_padded * bb
                        + mp * n_padded * ob),
    )

    out = pl.pallas_call(
        _classifier_kernel,
        out_shape=jax.ShapeDtypeStruct((mp, n_padded), out_dtype),
        grid_spec=pltpu.PrefetchScalarGridSpec(
            num_scalar_prefetch=0,
            grid=grid,
            in_specs=[
                # Activation tile: changes only along the inner (M) axis.
                pl.BlockSpec((tile_m_eff, in_features), lambda j, i: (i, 0)),
                # Weight tile: changes only along the outer (vocab) axis ->
                # fetched exactly once per vocab tile (W streamed once total).
                pl.BlockSpec((in_features, tile_n), lambda j, i: (0, j)),
                # Matching bias tile.
                pl.BlockSpec((1, tile_n), lambda j, i: (0, j)),
            ],
            out_specs=pl.BlockSpec((tile_m_eff, tile_n), lambda j, i: (i, j)),
        ),
        compiler_params=pltpu.CompilerParams(
            dimension_semantics=("parallel", "parallel"),
            vmem_limit_bytes=vmem_limit,
        ),
        cost_estimate=cost,
    )(x2d, w_t, b_padded)

    if mp != m or n_padded != out_features:
        out = out[:m, :out_features]
    return out.reshape(*lead_shape, out_features)


def classifier_forward(x, weight, bias, *, tile_m=512, tile_n=512, out_dtype=None):
    """Convenience wrapper. For production, call prepare_classifier_params once
    at init and reuse its output with classifier_forward_padded."""
    w_t, b_p, tn = prepare_classifier_params(weight, bias, tile_n=tile_n)
    return classifier_forward_padded(
        x, w_t, b_p, out_features=weight.shape[0],
        tile_m=tile_m, tile_n=tn, out_dtype=out_dtype)


def init_classifier_params(key, in_features, out_features, init_weight=0.1,
                           dtype=jnp.float32):
    """uniform(-init_weight, init_weight) init, matching the PyTorch module."""
    kw, kb = jax.random.split(key)
    weight = jax.random.uniform(
        kw, (out_features, in_features), dtype=dtype,
        minval=-init_weight, maxval=init_weight)
    bias = jax.random.uniform(
        kb, (out_features,), dtype=dtype,
        minval=-init_weight, maxval=init_weight)
    return weight, bias


if __name__ == "__main__":
    key = jax.random.PRNGKey(0)
    k_x, k_p, k_x2, k_p2 = jax.random.split(key, 4)

    # ---- Case 1: GNMT-decoder-like shapes, f32 -------------------------------
    seq, batch, hidden, vocab = 8, 2, 32, 256
    x = jax.random.normal(k_x, (seq, batch, hidden), dtype=jnp.float32)
    weight, bias = init_classifier_params(k_p, hidden, vocab, init_weight=0.1)

    w_t, b_p, tn = prepare_classifier_params(weight, bias, tile_n=512)
    out = classifier_forward_padded(x, w_t, b_p, out_features=vocab, tile_n=tn)
    out = jax.block_until_ready(out)
    ref = x @ weight.T + bias
    assert out.shape == (seq, batch, vocab), out.shape
    assert jnp.allclose(out, ref, atol=1e-5, rtol=1e-5), \
        float(jnp.max(jnp.abs(out - ref)))

    # ---- Case 2: ragged M and vocab (exercises padding + final slice), f32 ---
    seq2, batch2, hidden2, vocab2 = 3, 5, 48, 300
    x2 = jax.random.normal(k_x2, (seq2, batch2, hidden2), dtype=jnp.float32)
    w2, bia2 = init_classifier_params(k_p2, hidden2, vocab2, init_weight=0.1)
    out2 = jax.block_until_ready(classifier_forward(x2, w2, bia2))
    ref2 = x2 @ w2.T + bia2
    assert out2.shape == (seq2, batch2, vocab2), out2.shape
    assert jnp.allclose(out2, ref2, atol=1e-5, rtol=1e-5), \
        float(jnp.max(jnp.abs(out2 - ref2)))

    # ---- Case 3: bf16 activations/weights, f32 accumulation ------------------
    x_bf = x.astype(jnp.bfloat16)
    w_bf = weight.astype(jnp.bfloat16)
    b_bf = bias.astype(jnp.bfloat16)
    out_bf = jax.block_until_ready(classifier_forward(x_bf, w_bf, b_bf))
    ref_bf = (x_bf.astype(jnp.float32) @ w_bf.astype(jnp.float32).T
              + b_bf.astype(jnp.float32))
    assert out_bf.shape == (seq, batch, vocab), out_bf.shape
    assert jnp.allclose(out_bf.astype(jnp.float32), ref_bf, atol=2e-2, rtol=2e-2), \
        float(jnp.max(jnp.abs(out_bf.astype(jnp.float32) - ref_bf)))

    print("KERNEL_OK")
</pallas_src>

<mosaic_0001>
module attributes {stable_mosaic.version = 11 : i64} {
  func.func @_classifier_kernel(%arg0: i32, %arg1: i32, %arg2: memref<16x32xf32, #tpu.memory_space<vmem>>, %arg3: memref<32x256xf32, #tpu.memory_space<vmem>>, %arg4: memref<1x256xf32, #tpu.memory_space<vmem>>, %arg5: memref<16x256xf32, #tpu.memory_space<vmem>>) attributes {dimension_semantics = [#tpu.dimension_semantics<parallel>, #tpu.dimension_semantics<parallel>], iteration_bounds = array<i64: 1, 1>, scalar_prefetch = 0 : i64, scratch_operands = 0 : i64, tpu.core_type = #tpu.core_type<tc>, window_params = [{transform_indices = @transform_0, window_bounds = array<i64: 16, 32>}, {transform_indices = @transform_1, window_bounds = array<i64: 32, 256>}, {transform_indices = @transform_2, window_bounds = array<i64: 1, 256>}, {transform_indices = @transform_3, window_bounds = array<i64: 16, 256>}]} {
    %c0 = arith.constant 0 : index
    %c0_0 = arith.constant 0 : index
    %0 = vector.load %arg2[%c0, %c0_0] : memref<16x32xf32, #tpu.memory_space<vmem>>, vector<16x32xf32>
    %c0_1 = arith.constant 0 : index
    %c0_2 = arith.constant 0 : index
    %1 = vector.load %arg3[%c0_1, %c0_2] : memref<32x256xf32, #tpu.memory_space<vmem>>, vector<32x256xf32>
    %cst = arith.constant dense<0.000000e+00> : vector<16x256xf32>
    %2 = tpu.matmul %0, %1, %cst {dimension_numbers = #tpu.dot_dimension_numbers<[1], [0], [0], [1], [0, 0, 1, 1], [], []>} : vector<16x32xf32>, vector<32x256xf32>, vector<16x256xf32> -> vector<16x256xf32>
    %c0_3 = arith.constant 0 : index
    %c0_4 = arith.constant 0 : index
    %3 = vector.load %arg4[%c0_3, %c0_4] : memref<1x256xf32, #tpu.memory_space<vmem>>, vector<1x256xf32>
    %4 = vector.broadcast %3 : vector<1x256xf32> to vector<16x256xf32>
    %5 = arith.addf %2, %4 : vector<16x256xf32>
    %c0_5 = arith.constant 0 : index
    %c0_6 = arith.constant 0 : index
    %6 = vector.load %arg5[%c0_5, %c0_6] : memref<16x256xf32, #tpu.memory_space<vmem>>, vector<16x256xf32>
    tpu.vector_store %arg5[%c0_5, %c0_6], %5 {strides = array<i32>} : memref<16x256xf32, #tpu.memory_space<vmem>>, vector<16x256xf32>,
    return
  }
  func.func @transform_0(%arg0: i32, %arg1: i32) -> (i32, i32) {
    %c0_i32 = arith.constant 0 : i32
    %c0_i32_0 = arith.constant 0 : i32
    return %arg1, %c0_i32 : i32, i32
  }
  func.func @transform_1(%arg0: i32, %arg1: i32) -> (i32, i32) {
    %c0_i32 = arith.constant 0 : i32
    %c0_i32_0 = arith.constant 0 : i32
    return %c0_i32, %arg0 : i32, i32
  }
  func.func @transform_2(%arg0: i32, %arg1: i32) -> (i32, i32) {
    %c0_i32 = arith.constant 0 : i32
    %c0_i32_0 = arith.constant 0 : i32
    return %c0_i32, %arg0 : i32, i32
  }
  func.func @transform_3(%arg0: i32, %arg1: i32) -> (i32, i32) {
    %c0_i32 = arith.constant 0 : i32
    return %arg1, %arg0 : i32, i32
  }
}

</mosaic_0001>

<llo_original>
// kernel: classifier_forward_padded.1
$region0: #{classifier_forward_padded.1}
  #allocation0 [shape = 'u32[]', space=smem, size = 0x4, offset = 0x4, fixed_abs, tag = 'smem constant byte address 0x4 - core index']
  #allocation1 [shape = 'u32[144,128]{1,0:T(1,128)}', space=vmem, size = 0x12000, scoped, tag = 'internal scratch']
  %s0 = inlined_call_operand.hbm [shape: f32[16,32], index: 0, kind: input, shape index: {}]
  %s1 = inlined_call_operand.hbm [shape: f32[32,256], index: 1, kind: input, shape index: {}]
  %s2 = inlined_call_operand.vmem [shape: f32[1,256], index: 2, kind: input, shape index: {}]
  %s3 = inlined_call_operand.vmem [shape: f32[16,256], index: 3, kind: output, shape index: {}]
  %s4 = sld [smem:[#allocation0]]
  $region30: #{classifier_forward_padded.1} parent=0
    _
  %s6 = ssub.s32 1, %s4
  %s7 = scalar_select 0, %s6, %s4
  $region1: #{classifier_forward_padded.1} parent=0
    #allocation2 [shape = 'u8[8192]{0}', space=vmem, size = 0x2000, scoped, tag = 'input window, operand 0, single buffered']
    #allocation3 [shape = 's32[1]{0}', space=sflag, size = 0x4, scoped, tag = 'scoped memory for classifier_forward_padded.1']
    #allocation4 [shape = 'u8[32768]{0}', space=vmem, size = 0x8000, scoped, tag = 'input window, operand 1, single buffered']
    #allocation5 [shape = 's32[1]{0}', space=sflag, size = 0x4, scoped, tag = 'scoped memory for classifier_forward_padded.1']
    %8 = vsyncpa [#allocation3], 0
    %9 = vsyncpa [#allocation5], 0
    // Predicated region
    $region2: #{classifier_forward_padded.1} parent=1 // pred_check
      _
    $region3: #{classifier_forward_padded.1} parent=1 // pred_check_branch
      %11 = sbr.rel (0) target = $region5
    $region4: #{classifier_forward_padded.1} parent=1 // pred_region
      %s13 = ssub.s32 256, 256
      %14 = vsyncadd [#allocation3], %s13
      %s15 = sshll.u32 [#allocation2], 4
      %s16 = int_to_ptr.vmem [resolvable:$true] %s15
      %21 = dma.hbm_to_vmem [thread:$0]  %s0, 256, %s16, [#allocation3], 128, 128, 8
    $region5: #{classifier_forward_padded.1} parent=1 // pred_fallthru
      _
    // Predicated region
    $region6: #{classifier_forward_padded.1} parent=1 // pred_check
      _
    $region7: #{classifier_forward_padded.1} parent=1 // pred_check_branch
      %23 = sbr.rel (0) target = $region9
    $region8: #{classifier_forward_padded.1} parent=1 // pred_region
      %s25 = ssub.s32 1024, 1024
      %26 = vsyncadd [#allocation5], %s25
      %s27 = sshll.u32 [#allocation4], 4
      %s28 = int_to_ptr.vmem [resolvable:$true] %s27
      %33 = dma.hbm_to_vmem [thread:$0]  %s1, 1024, %s28, [#allocation5], 256, 256, 16
    $region9: #{classifier_forward_padded.1} parent=1 // pred_fallthru
      _
    // Predicated region
    $region10: #{classifier_forward_padded.1} parent=1 // pred_check
      _
    $region11: #{classifier_forward_padded.1} parent=1 // pred_check_branch
      %35 = sbr.rel (0) target = $region13
    $region12: #{classifier_forward_padded.1} parent=1 // pred_region
      _
    $region13: #{classifier_forward_padded.1} parent=1 // pred_fallthru
      _
    // Predicated region
    $region14: #{classifier_forward_padded.1} parent=1 // pred_check
      _
    $region15: #{classifier_forward_padded.1} parent=1 // pred_check_branch
      %37 = sbr.rel (0) target = $region17
    $region16: #{classifier_forward_padded.1} parent=1 // pred_region
      %38 = dma.done [#allocation3], 256
    $region17: #{classifier_forward_padded.1} parent=1 // pred_fallthru
      _
    // Predicated region
    $region18: #{classifier_forward_padded.1} parent=1 // pred_check
      _
    $region19: #{classifier_forward_padded.1} parent=1 // pred_check_branch
      %40 = sbr.rel (0) target = $region21
    $region20: #{classifier_forward_padded.1} parent=1 // pred_region
      %41 = dma.done [#allocation5], 1024
    $region21: #{classifier_forward_padded.1} parent=1 // pred_fallthru
      _
    %v42 = vld [vmem:[#allocation2] sm:$0xff]
    %v43 = vld [vmem:[#allocation2 + $0x8] sm:$0xff]
    %v44 = vld [vmem:[#allocation4] sm:$0xff]
    %v45 = vld [vmem:[#allocation4 + $0x8] sm:$0xff]
    %v46 = vld [vmem:[#allocation4 + $0x10] sm:$0xff]
    %v47 = vld [vmem:[#allocation4 + $0x18] sm:$0xff]
    %v48 = vld [vmem:[#allocation4 + $0x20] sm:$0xff]
    %v49 = vld [vmem:[#allocation4 + $0x28] sm:$0xff]
    %v50 = vld [vmem:[#allocation4 + $0x30] sm:$0xff]
    %v51 = vld [vmem:[#allocation4 + $0x38] sm:$0xff]
    %v52 = vld [vmem:[%s2] sm:$0x3]
    %v54 = vlaneseq
    %v55 = vshrl.u32 %v54, 7
    %v56 = vsub.s32 0, %v55
    %v57 = vrot.slane %v52, %v56
    %v58 = vlaneseq
    %v59 = vshrl.u32 %v58, 7
    %v60 = vsub.s32 1, %v59
    %v61 = vrot.slane %v52, %v60
    %vm64 = vcmask 261120
    %v66 = vsel %vm64, %v42, 0
    %v69 = vsel %vm64, %v43, 0
    %71 = vmatprep.subr.mxu0 %v45
    %72 = vmatpush1.msra.mxu0 %v44
    %73 = vmatprep.subr.mxu0 %v47
    %74 = vmatpush1.msra.mxu0 %v46
    %75 = vmatprep.subr.mxu0 %v49
    %76 = vmatpush1.msra.mxu0 %v48
    %77 = vmatprep.subr.mxu0 %v51
    %78 = vmatpush1.msra.mxu0 %v50
    %79 = vmatprep.subr.mxu0 0.0
    %80 = vmatpush1.msra.mxu0 0.0
    %81 = vmatprep.subr.mxu0 0.0
    %82 = vmatpush1.msra.mxu0 0.0
    %83 = vmatprep.subr.mxu0 0.0
    %84 = vmatpush1.msra.mxu0 0.0
    %85 = vmatprep.subr.mxu0 0.0
    %86 = vmatpush1.msra.mxu0 0.0
    %87 = vmatprep.subr.mxu0 0.0
    %88 = vmatpush1.msra.mxu0 0.0
    %89 = vmatprep.subr.mxu0 0.0
    %90 = vmatpush1.msra.mxu0 0.0
    %91 = vmatprep.subr.mxu0 0.0
    %92 = vmatpush1.msra.mxu0 0.0
    %93 = vmatprep.subr.mxu0 0.0
    %94 = vmatpush1.msra.mxu0 0.0
    %95 = vmatprep.subr.mxu0 0.0
    %96 = vmatpush1.msra.mxu0 0.0
    %97 = vmatprep.subr.mxu0 0.0
    %98 = vmatpush1.msra.mxu0 0.0
    %99 = vmatprep.subr.mxu0 0.0
    %100 = vmatpush1.msra.mxu0 0.0
    %101 = vmatprep.subr.mxu0 0.0
    %102 = vmatpush1.msra.mxu0 0.0
    %103 = vmatprep.subr.mxu0 0.0
    %104 = vmatpush1.msra.mxu0 0.0
    %105 = vmatprep.subr.mxu0 0.0
    %106 = vmatpush1.msra.mxu0 0.0
    %107 = vmatprep.subr.mxu0 0.0
    %108 = vmatpush1.msra.mxu0 0.0
    %109 = vmatprep.subr.mxu0 0.0
    %110 = vmatpush1.msra.mxu0 0.0
    %111 = vmatprep.subr.mxu0 0.0
    %112 = vmatpush1.msra.mxu0 0.0
    %113 = vmatprep.subr.mxu0 0.0
    %114 = vmatpush1.msra.mxu0 0.0
    %115 = vmatprep.subr.mxu0 0.0
    %116 = vmatpush1.msra.mxu0 0.0
    %117 = vmatprep.subr.mxu0 0.0
    %118 = vmatpush1.msra.mxu0 0.0
    %119 = vmatprep.subr.mxu0 0.0
    %120 = vmatpush1.msra.mxu0 0.0
    %121 = vmatprep.subr.mxu0 0.0
    %122 = vmatpush1.msra.mxu0 0.0
    %123 = vmatprep.subr.mxu0 0.0
    %124 = vmatpush1.msra.mxu0 0.0
    %125 = vmatprep.subr.mxu0 0.0
    %126 = vmatpush1.msra.mxu0 0.0
    %127 = vmatprep.subr.mxu0 0.0
    %128 = vmatpush1.msra.mxu0 0.0
    %129 = vmatprep.subr.mxu0 0.0
    %130 = vmatpush1.msra.mxu0 0.0
    %131 = vmatprep.subr.mxu0 0.0
    %132 = vmatpush1.msra.mxu0 0.0
    %133 = vmatprep.subr.mxu0 0.0
    %134 = vmatpush1.msra.mxu0 0.0
    %135 = vmatprep.mubr.f32.mxu0 0.0
    %136 = vmatmul.mubr.f32.gmra.mrb[0].mxu0 %v66
    %v137 = vpop.f32.mrb[0].mxu0
    %v138 = vadd.f32 %v57, %v137
    %v139 = vpop.f32.mrb[0].mxu0
    %v140 = vadd.f32 %v61, %v139
    %141 = vmatprep.mubr.f32.mxu0 0.0
    %142 = vmatmul.mubr.f32.gmra.mrb[0].mxu0 %v69
    %v143 = vpop.f32.mrb[0].mxu0
    %v144 = vadd.f32 %v57, %v143
    %v145 = vpop.f32.mrb[0].mxu0
    %v146 = vadd.f32 %v61, %v145
    %147 = vdwg.mxu0
    %148 = vst [vmem:[%s3] sm:$0xff] %v138
    %149 = vst [vmem:[%s3 + $0x8] sm:$0xff] %v140
    %150 = vst [vmem:[%s3 + $0x10] sm:$0xff] %v144
    %151 = vst [vmem:[%s3 + $0x18] sm:$0xff] %v146
    // Predicated region
    $region22: #{classifier_forward_padded.1} parent=1 // pred_check
      _
    $region23: #{classifier_forward_padded.1} parent=1 // pred_check_branch
      %153 = sbr.rel (0) target = $region25
    $region24: #{classifier_forward_padded.1} parent=1 // pred_region
      _
    $region25: #{classifier_forward_padded.1} parent=1 // pred_fallthru
      _
    // Predicated region
    $region26: #{classifier_forward_padded.1} parent=1 // pred_check
      _
    $region27: #{classifier_forward_padded.1} parent=1 // pred_check_branch
      %155 = sbr.rel (0) target = $region29
    $region28: #{classifier_forward_padded.1} parent=1 // pred_region
      _
    $region29: #{classifier_forward_padded.1} parent=1 // pred_fallthru
      _
    %156 = vsyncpa [#allocation3], 1
    %157 = vsyncpa [#allocation5], 1

</llo_original>
